<compile_context>
chip_gen: v6e
topology: v6e:2x2x1
jax: 0.10.0
libtpu: 0.0.40
codegen_flags: <defaults>
</compile_context>

<pallas_src>
import jax
import jax.numpy as jnp
from jax.experimental import pallas as pl
from jax.experimental.pallas import tpu as pltpu

NUM_FEATURES = 16   # "num_features" global in the reference code
LAYER_SIZE = 32     # Layer_size ctor arg
BATCH = 8
HEAD_OUT = 2        # each head is Linear(L, 2)
OUT_PAD = 8         # stored output columns (0:2=v1, 2:4=v2, 4:8=zero pad)


def _round8(n):
    return (n + 7) // 8 * 8


def _pack_params(params, F, L):
    """Pack all weights/biases into one (rows, L) f32 slab, 8-row aligned."""
    o_w1 = 0
    o_b1 = o_w1 + _round8(2 * F)
    o_w2 = o_b1 + 8
    o_b2 = o_w2 + _round8(L)
    o_w3 = o_b2 + 8
    o_b3 = o_w3 + _round8(L)
    o_wh = o_b3 + 8
    o_bh = o_wh + _round8(L)
    rows = o_bh + 8

    slab = jnp.zeros((rows, L), jnp.float32)
    # PyTorch Linear stores W as (out, in); kernel wants (in, out).
    slab = slab.at[o_w1:o_w1 + 2 * F, :].set(params["w1"].T)
    slab = slab.at[o_b1, :].set(params["b1"])
    slab = slab.at[o_w2:o_w2 + L, :].set(params["w2"].T)
    slab = slab.at[o_b2, :].set(params["b2"])
    slab = slab.at[o_w3:o_w3 + L, :].set(params["w3"].T)
    slab = slab.at[o_b3, :].set(params["b3"])
    # Fused heads: columns [0:2] = head1, [2:4] = head2, rest exact zeros.
    wh = jnp.concatenate([params["wh1"], params["wh2"]], axis=0).T   # (L, 4)
    bh = jnp.concatenate([params["bh1"], params["bh2"]], axis=0)     # (4,)
    slab = slab.at[o_wh:o_wh + L, :2 * HEAD_OUT].set(wh)
    slab = slab.at[o_bh, :2 * HEAD_OUT].set(bh)

    offs = (o_w1, o_b1, o_w2, o_b2, o_w3, o_b3, o_wh, o_bh)
    return slab, offs


def _make_kernel(F, L, offs, out_cols):
    o_w1, o_b1, o_w2, o_b2, o_w3, o_b3, o_wh, o_bh = offs

    def kernel(x_ref, s_ref, p_ref, out_ref):
        x = x_ref[...]
        s = s_ref[...]

        def dense(a, o_w, o_b, k_rows):
            w = p_ref[o_w:o_w + k_rows, :]                      # static slice
            b = p_ref[o_b:o_b + 1, :]
            return jnp.dot(a, w, preferred_element_type=jnp.float32) + b

        # MaskLayer1d(value=0, append=True) + Linear(2F, L):
        #   cat([x*s, s]) @ W1 == (x*s) @ W1a + s @ W1b   (split along K)
        w1a = p_ref[o_w1:o_w1 + F, :]
        w1b = p_ref[o_w1 + F:o_w1 + 2 * F, :]
        b1 = p_ref[o_b1:o_b1 + 1, :]
        h = (jnp.dot(x * s, w1a, preferred_element_type=jnp.float32)
             + jnp.dot(s, w1b, preferred_element_type=jnp.float32) + b1)
        h = jnp.maximum(h, 0.0)                                  # ReLU

        h = jnp.maximum(dense(h, o_w2, o_b2, L), 0.0)            # Linear+ReLU
        h = jnp.maximum(dense(h, o_w3, o_b3, L), 0.0)            # Linear+ReLU

        # Fused heads: one dot; only the first out_cols columns are stored
        # (cols 0:2 = v1, 2:4 = v2, 4:out_cols exact zeros).
        out_full = dense(h, o_wh, o_bh, L)                       # (tile, L)
        out_ref[...] = out_full[:, :out_cols]                    # (tile, 8)

    return kernel


def multi_task_forward(x, s, params, *, batch_tile=4096):
    """x, s: (B, F) float32. params: dict of PyTorch-convention weights.

    Returns (v1, v2), each (B, 2) float32.
    """
    B, F = x.shape
    L = params["w2"].shape[0]

    slab, offs = _pack_params(params, F, L)
    kernel = _make_kernel(F, L, offs, OUT_PAD)

    # Tile selection:
    #  * large tiles amortize the ~0.35us/step pipeline overhead,
    #  * but keep >= 2 tiles when the batch is large enough so the "parallel"
    #    batch axis can be sharded across v7x's two TensorCores,
    #  * tile is a multiple of 8 (sublane constraint); batch is zero-padded
    #    to a tile multiple and the pad rows are sliced off the output.
    if B > 1024:
        tile = min(batch_tile, _round8(pl.cdiv(B, 2)))
    else:
        tile = _round8(B)
    tile = max(tile, 8)

    padded_B = pl.cdiv(B, tile) * tile
    if padded_B != B:
        pad = padded_B - B
        x = jnp.pad(x, ((0, pad), (0, 0)))
        s = jnp.pad(s, ((0, pad), (0, 0)))
    grid = (padded_B // tile,)

    out = pl.pallas_call(
        kernel,
        grid=grid,
        out_shape=jax.ShapeDtypeStruct((padded_B, OUT_PAD), jnp.float32),
        in_specs=[
            pl.BlockSpec((tile, F), lambda i: (i, 0)),
            pl.BlockSpec((tile, F), lambda i: (i, 0)),
            pl.BlockSpec(slab.shape, lambda i: (0, 0)),   # weights resident
        ],
        out_specs=pl.BlockSpec((tile, OUT_PAD), lambda i: (i, 0)),
        compiler_params=pltpu.CompilerParams(
            dimension_semantics=("parallel",)),
    )(x, s, slab)

    out = out[:B]
    v1 = out[:, 0:HEAD_OUT]
    v2 = out[:, HEAD_OUT:2 * HEAD_OUT]
    return v1, v2


def init_params(key, num_features=NUM_FEATURES, layer_size=LAYER_SIZE):
    ks = jax.random.split(key, 10)

    def lin(kw, kb, fan_in, fan_out):
        bound = 1.0 / jnp.sqrt(fan_in)
        w = jax.random.uniform(kw, (fan_out, fan_in), jnp.float32, -bound, bound)
        b = jax.random.uniform(kb, (fan_out,), jnp.float32, -bound, bound)
        return w, b

    w1, b1 = lin(ks[0], ks[1], 2 * num_features, layer_size)
    w2, b2 = lin(ks[2], ks[3], layer_size, layer_size)
    w3, b3 = lin(ks[4], ks[5], layer_size, layer_size)
    wh1, bh1 = lin(ks[6], ks[7], layer_size, HEAD_OUT)
    wh2, bh2 = lin(ks[8], ks[9], layer_size, HEAD_OUT)
    return dict(w1=w1, b1=b1, w2=w2, b2=b2, w3=w3, b3=b3,
                wh1=wh1, bh1=bh1, wh2=wh2, bh2=bh2)


def _reference(x, s, p):
    # Pure-JAX reference of the PyTorch forward (for sanity checking).
    xm = x * s
    h = jnp.concatenate([xm, s], axis=1)
    h = jnp.maximum(h @ p["w1"].T + p["b1"], 0.0)
    h = jnp.maximum(h @ p["w2"].T + p["b2"], 0.0)
    h = jnp.maximum(h @ p["w3"].T + p["b3"], 0.0)
    return h @ p["wh1"].T + p["bh1"], h @ p["wh2"].T + p["bh2"]


if __name__ == "__main__":
    key = jax.random.PRNGKey(0)
    kx, ks_, kp, kx2, ks2, kx3, ks3 = jax.random.split(key, 7)

    params = init_params(kp)

    # Small demo case (matches the module's trivial usage): single tile.
    x = jax.random.normal(kx, (BATCH, NUM_FEATURES), jnp.float32)
    s = (jax.random.uniform(ks_, (BATCH, NUM_FEATURES)) > 0.5).astype(jnp.float32)
    v1, v2 = multi_task_forward(x, s, params)
    jax.block_until_ready((v1, v2))
    r1, r2 = _reference(x, s, params)
    assert jnp.allclose(v1, r1, atol=1e-5, rtol=1e-5)
    assert jnp.allclose(v2, r2, atol=1e-5, rtol=1e-5)

    # Batched fastshap-style case: many mask samples in one call; two tiles
    # so the "parallel" batch axis exercises both v7x TensorCores.
    BB = 2048
    xb = jax.random.normal(kx2, (BB, NUM_FEATURES), jnp.float32)
    sb = (jax.random.uniform(ks2, (BB, NUM_FEATURES)) > 0.5).astype(jnp.float32)
    vb1, vb2 = multi_task_forward(xb, sb, params)
    jax.block_until_ready((vb1, vb2))
    rb1, rb2 = _reference(xb, sb, params)
    assert jnp.allclose(vb1, rb1, atol=1e-5, rtol=1e-5)
    assert jnp.allclose(vb2, rb2, atol=1e-5, rtol=1e-5)

    # Non-multiple batch size: exercises the wrapper-side pad + slice path.
    B3 = 203
    xc = jax.random.normal(kx3, (B3, NUM_FEATURES), jnp.float32)
    sc = (jax.random.uniform(ks3, (B3, NUM_FEATURES)) > 0.5).astype(jnp.float32)
    vc1, vc2 = multi_task_forward(xc, sc, params)
    jax.block_until_ready((vc1, vc2))
    rc1, rc2 = _reference(xc, sc, params)
    assert jnp.allclose(vc1, rc1, atol=1e-5, rtol=1e-5)
    assert jnp.allclose(vc2, rc2, atol=1e-5, rtol=1e-5)

    print("KERNEL_OK")
</pallas_src>

<mosaic_0001>
module attributes {stable_mosaic.version = 11 : i64} {
  func.func @kernel(%arg0: i32, %arg1: memref<8x16xf32, #tpu.memory_space<vmem>>, %arg2: memref<8x16xf32, #tpu.memory_space<vmem>>, %arg3: memref<160x32xf32, #tpu.memory_space<vmem>>, %arg4: memref<8x8xf32, #tpu.memory_space<vmem>>) attributes {dimension_semantics = [#tpu.dimension_semantics<parallel>], iteration_bounds = array<i64: 1>, scalar_prefetch = 0 : i64, scratch_operands = 0 : i64, tpu.core_type = #tpu.core_type<tc>, window_params = [{transform_indices = @transform_0, window_bounds = array<i64: 8, 16>}, {transform_indices = @transform_1, window_bounds = array<i64: 8, 16>}, {pipeline_mode = #tpu.pipeline_mode<synchronous>, transform_indices = @transform_2, window_bounds = array<i64: 160, 32>}, {transform_indices = @transform_3, window_bounds = array<i64: 8, 8>}]} {
    %c0 = arith.constant 0 : index
    %c0_0 = arith.constant 0 : index
    %0 = vector.load %arg1[%c0, %c0_0] : memref<8x16xf32, #tpu.memory_space<vmem>>, vector<8x16xf32>
    %c0_1 = arith.constant 0 : index
    %c0_2 = arith.constant 0 : index
    %1 = vector.load %arg2[%c0_1, %c0_2] : memref<8x16xf32, #tpu.memory_space<vmem>>, vector<8x16xf32>
    %c0_3 = arith.constant 0 : index
    %c0_4 = arith.constant 0 : index
    %2 = vector.load %arg3[%c0_3, %c0_4] : memref<160x32xf32, #tpu.memory_space<vmem>>, vector<16x32xf32>
    %c16 = arith.constant 16 : index
    %c0_5 = arith.constant 0 : index
    %3 = vector.load %arg3[%c16, %c0_5] : memref<160x32xf32, #tpu.memory_space<vmem>>, vector<16x32xf32>
    %c32 = arith.constant 32 : index
    %c0_6 = arith.constant 0 : index
    %4 = vector.load %arg3[%c32, %c0_6] : memref<160x32xf32, #tpu.memory_space<vmem>>, vector<1x32xf32>
    %5 = arith.mulf %0, %1 : vector<8x16xf32>
    %cst = arith.constant dense<0.000000e+00> : vector<8x32xf32>
    %6 = tpu.matmul %5, %2, %cst {dimension_numbers = #tpu.dot_dimension_numbers<[1], [0], [0], [1], [0, 0, 1, 1], [], []>} : vector<8x16xf32>, vector<16x32xf32>, vector<8x32xf32> -> vector<8x32xf32>
    %cst_7 = arith.constant dense<0.000000e+00> : vector<8x32xf32>
    %7 = tpu.matmul %1, %3, %cst_7 {dimension_numbers = #tpu.dot_dimension_numbers<[1], [0], [0], [1], [0, 0, 1, 1], [], []>} : vector<8x16xf32>, vector<16x32xf32>, vector<8x32xf32> -> vector<8x32xf32>
    %8 = arith.addf %6, %7 : vector<8x32xf32>
    %9 = vector.broadcast %4 : vector<1x32xf32> to vector<8x32xf32>
    %10 = arith.addf %8, %9 : vector<8x32xf32>
    %cst_8 = arith.constant 0.000000e+00 : f32
    %11 = vector.broadcast %cst_8 : f32 to vector<8x32xf32>
    %12 = arith.maximumf %10, %11 : vector<8x32xf32>
    %c40 = arith.constant 40 : index
    %c0_9 = arith.constant 0 : index
    %13 = vector.load %arg3[%c40, %c0_9] : memref<160x32xf32, #tpu.memory_space<vmem>>, vector<32x32xf32>
    %c72 = arith.constant 72 : index
    %c0_10 = arith.constant 0 : index
    %14 = vector.load %arg3[%c72, %c0_10] : memref<160x32xf32, #tpu.memory_space<vmem>>, vector<1x32xf32>
    %cst_11 = arith.constant dense<0.000000e+00> : vector<8x32xf32>
    %15 = tpu.matmul %12, %13, %cst_11 {dimension_numbers = #tpu.dot_dimension_numbers<[1], [0], [0], [1], [0, 0, 1, 1], [], []>} : vector<8x32xf32>, vector<32x32xf32>, vector<8x32xf32> -> vector<8x32xf32>
    %16 = vector.broadcast %14 : vector<1x32xf32> to vector<8x32xf32>
    %17 = arith.addf %15, %16 : vector<8x32xf32>
    %cst_12 = arith.constant 0.000000e+00 : f32
    %18 = vector.broadcast %cst_12 : f32 to vector<8x32xf32>
    %19 = arith.maximumf %17, %18 : vector<8x32xf32>
    %c80 = arith.constant 80 : index
    %c0_13 = arith.constant 0 : index
    %20 = vector.load %arg3[%c80, %c0_13] : memref<160x32xf32, #tpu.memory_space<vmem>>, vector<32x32xf32>
    %c112 = arith.constant 112 : index
    %c0_14 = arith.constant 0 : index
    %21 = vector.load %arg3[%c112, %c0_14] : memref<160x32xf32, #tpu.memory_space<vmem>>, vector<1x32xf32>
    %cst_15 = arith.constant dense<0.000000e+00> : vector<8x32xf32>
    %22 = tpu.matmul %19, %20, %cst_15 {dimension_numbers = #tpu.dot_dimension_numbers<[1], [0], [0], [1], [0, 0, 1, 1], [], []>} : vector<8x32xf32>, vector<32x32xf32>, vector<8x32xf32> -> vector<8x32xf32>
    %23 = vector.broadcast %21 : vector<1x32xf32> to vector<8x32xf32>
    %24 = arith.addf %22, %23 : vector<8x32xf32>
    %cst_16 = arith.constant 0.000000e+00 : f32
    %25 = vector.broadcast %cst_16 : f32 to vector<8x32xf32>
    %26 = arith.maximumf %24, %25 : vector<8x32xf32>
    %c120 = arith.constant 120 : index
    %c0_17 = arith.constant 0 : index
    %27 = vector.load %arg3[%c120, %c0_17] : memref<160x32xf32, #tpu.memory_space<vmem>>, vector<32x32xf32>
    %c152 = arith.constant 152 : index
    %c0_18 = arith.constant 0 : index
    %28 = vector.load %arg3[%c152, %c0_18] : memref<160x32xf32, #tpu.memory_space<vmem>>, vector<1x32xf32>
    %cst_19 = arith.constant dense<0.000000e+00> : vector<8x32xf32>
    %29 = tpu.matmul %26, %27, %cst_19 {dimension_numbers = #tpu.dot_dimension_numbers<[1], [0], [0], [1], [0, 0, 1, 1], [], []>} : vector<8x32xf32>, vector<32x32xf32>, vector<8x32xf32> -> vector<8x32xf32>
    %30 = vector.broadcast %28 : vector<1x32xf32> to vector<8x32xf32>
    %31 = arith.addf %29, %30 : vector<8x32xf32>
    %32 = vector.extract_strided_slice %31 {offsets = [0, 0], sizes = [8, 8], strides = [1, 1]} : vector<8x32xf32> to vector<8x8xf32>
    %c0_20 = arith.constant 0 : index
    %c0_21 = arith.constant 0 : index
    %33 = vector.load %arg4[%c0_20, %c0_21] : memref<8x8xf32, #tpu.memory_space<vmem>>, vector<8x8xf32>
    tpu.vector_store %arg4[%c0_20, %c0_21], %32 {strides = array<i32>} : memref<8x8xf32, #tpu.memory_space<vmem>>, vector<8x8xf32>,
    return
  }
  func.func @transform_0(%arg0: i32) -> (i32, i32) {
    %c0_i32 = arith.constant 0 : i32
    %c0_i32_0 = arith.constant 0 : i32
    return %arg0, %c0_i32 : i32, i32
  }
  func.func @transform_1(%arg0: i32) -> (i32, i32) {
    %c0_i32 = arith.constant 0 : i32
    %c0_i32_0 = arith.constant 0 : i32
    return %arg0, %c0_i32 : i32, i32
  }
  func.func @transform_2(%arg0: i32) -> (i32, i32) {
    %c0_i32 = arith.constant 0 : i32
    %c0_i32_0 = arith.constant 0 : i32
    %c0_i32_1 = arith.constant 0 : i32
    return %c0_i32, %c0_i32_0 : i32, i32
  }
  func.func @transform_3(%arg0: i32) -> (i32, i32) {
    %c0_i32 = arith.constant 0 : i32
    %c0_i32_0 = arith.constant 0 : i32
    return %arg0, %c0_i32 : i32, i32
  }
}

</mosaic_0001>

<llo_original>
// kernel: tpu_custom_call.1
$region0: #{tpu_custom_call.1}
  #allocation0 [shape = 'u32[]', space=smem, size = 0x4, offset = 0x4, fixed_abs, tag = 'smem constant byte address 0x4 - core index']
  #allocation1 [shape = 'u32[144,128]{1,0:T(1,128)}', space=vmem, size = 0x12000, scoped, tag = 'internal scratch']
  %s0 = inlined_call_operand.vmem [shape: f32[8,16], index: 0, kind: input, shape index: {}]
  %s1 = inlined_call_operand.vmem [shape: f32[8,16], index: 1, kind: input, shape index: {}]
  %s2 = inlined_call_operand.vmem [shape: f32[160,32], index: 2, kind: input, shape index: {}]
  %s3 = inlined_call_operand.hbm [shape: f32[8,8], index: 3, kind: output, shape index: {}]
  %s4 = sld [smem:[#allocation0]]
  $region22: #{tpu_custom_call.1} parent=0
    _
  %s6 = ssub.s32 1, %s4
  %s7 = scalar_select 0, %s6, %s4
  $region1: #{tpu_custom_call.1} parent=0
    #allocation2 [shape = 'u8[4096]{0}', space=vmem, size = 0x1000, scoped, tag = 'output window, operand 0, single buffered']
    #allocation3 [shape = 's32[1]{0}', space=sflag, size = 0x4, scoped, tag = 'scoped memory for tpu_custom_call.1']
    %8 = vsyncpa [#allocation3], 0
    // Predicated region
    $region2: #{tpu_custom_call.1} parent=1 // pred_check
      _
    $region3: #{tpu_custom_call.1} parent=1 // pred_check_branch
      %10 = sbr.rel (0) target = $region5
    $region4: #{tpu_custom_call.1} parent=1 // pred_region
      _
    $region5: #{tpu_custom_call.1} parent=1 // pred_fallthru
      _
    // Predicated region
    $region6: #{tpu_custom_call.1} parent=1 // pred_check
      _
    $region7: #{tpu_custom_call.1} parent=1 // pred_check_branch
      %12 = sbr.rel (0) target = $region9
    $region8: #{tpu_custom_call.1} parent=1 // pred_region
      _
    $region9: #{tpu_custom_call.1} parent=1 // pred_fallthru
      _
    // Predicated region
    $region10: #{tpu_custom_call.1} parent=1 // pred_check
      _
    $region11: #{tpu_custom_call.1} parent=1 // pred_check_branch
      %14 = sbr.rel (0) target = $region13
    $region12: #{tpu_custom_call.1} parent=1 // pred_region
      _
    $region13: #{tpu_custom_call.1} parent=1 // pred_fallthru
      _
    %v15 = vld [vmem:[%s0] sm:$0xff]
    %v16 = vld [vmem:[%s1] sm:$0xff]
    %v17 = vld [vmem:[%s2] sm:$0xff]
    %v18 = vld [vmem:[%s2 + $0x8] sm:$0xff]
    %v19 = vld [vmem:[%s2 + $0x10] sm:$0xff]
    %v20 = vld [vmem:[%s2 + $0x18] sm:$0xff]
    %v21 = vld [vmem:[%s2 + $0x20] sm:$0x1]
    %v22 = vmul.f32 %v15, %v16
    %vm23 = vcmask 130048
    %v25 = vsel %vm23, %v16, 0
    %27 = vmatprep.subr.mxu0 0.0
    %28 = vmatpush1.msra.mxu0 0.0
    %29 = vmatprep.subr.mxu0 0.0
    %30 = vmatpush1.msra.mxu0 0.0
    %31 = vmatprep.subr.mxu0 0.0
    %32 = vmatpush1.msra.mxu0 0.0
    %33 = vmatprep.subr.mxu0 0.0
    %34 = vmatpush1.msra.mxu0 0.0
    %35 = vmatprep.subr.mxu0 0.0
    %36 = vmatpush1.msra.mxu0 0.0
    %37 = vmatprep.subr.mxu0 0.0
    %38 = vmatpush1.msra.mxu0 0.0
    %39 = vmatprep.subr.mxu0 0.0
    %40 = vmatpush1.msra.mxu0 0.0
    %41 = vmatprep.subr.mxu0 0.0
    %42 = vmatpush1.msra.mxu0 0.0
    %43 = vmatprep.subr.mxu0 0.0
    %44 = vmatpush1.msra.mxu0 0.0
    %45 = vmatprep.subr.mxu0 0.0
    %46 = vmatpush1.msra.mxu0 0.0
    %47 = vmatprep.subr.mxu0 0.0
    %48 = vmatpush1.msra.mxu0 0.0
    %49 = vmatprep.subr.mxu0 0.0
    %50 = vmatpush1.msra.mxu0 0.0
    %51 = vmatprep.subr.mxu0 0.0
    %52 = vmatpush1.msra.mxu0 0.0
    %53 = vmatprep.subr.mxu0 0.0
    %54 = vmatpush1.msra.mxu0 0.0
    %55 = vmatprep.subr.mxu0 0.0
    %56 = vmatpush1.msra.mxu0 %v20
    %57 = vmatprep.subr.mxu0 0.0
    %58 = vmatpush1.msra.mxu0 %v19
    %59 = vmatprep.subr.mxu0 0.0
    %60 = vmatpush2.msra.mxu0 0.0
    %61 = vmatprep.subr.mxu0 0.0
    %62 = vmatpush2.msra.mxu0 0.0
    %63 = vmatprep.subr.mxu0 0.0
    %64 = vmatpush2.msra.mxu0 0.0
    %65 = vmatprep.subr.mxu0 0.0
    %66 = vmatpush2.msra.mxu0 0.0
    %67 = vmatprep.subr.mxu0 0.0
    %68 = vmatpush2.msra.mxu0 0.0
    %69 = vmatprep.subr.mxu0 0.0
    %70 = vmatpush2.msra.mxu0 0.0
    %71 = vmatprep.subr.mxu0 0.0
    %72 = vmatpush2.msra.mxu0 0.0
    %73 = vmatprep.subr.mxu0 0.0
    %74 = vmatpush2.msra.mxu0 0.0
    %75 = vmatprep.subr.mxu0 0.0
    %76 = vmatpush2.msra.mxu0 0.0
    %77 = vmatprep.subr.mxu0 0.0
    %78 = vmatpush2.msra.mxu0 0.0
    %79 = vmatprep.subr.mxu0 0.0
    %80 = vmatpush2.msra.mxu0 0.0
    %81 = vmatprep.subr.mxu0 0.0
    %82 = vmatpush2.msra.mxu0 0.0
    %83 = vmatprep.subr.mxu0 0.0
    %84 = vmatpush2.msra.mxu0 0.0
    %85 = vmatprep.subr.mxu0 0.0
    %86 = vmatpush2.msra.mxu0 0.0
    %87 = vmatprep.subr.mxu0 0.0
    %88 = vmatpush2.msra.mxu0 0.0
    %89 = vmatprep.subr.mxu0 0.0
    %90 = vmatpush2.msra.mxu0 0.0
    %91 = vmatprep.mubr.f32.mxu0 0.0
    %92 = vmatmul.mubr.f32.gmra.mxu0 %v25
    %v93 = vpop.f32.mrf.mxu0
    %v94 = vadd.f32 0.0, %v93
    %v95 = vpop.f32.mrf.mxu0
    %96 = vdwg.mxu0
    %v98 = vsel %vm23, %v22, 0
    %100 = vmatprep.subr.mxu0 0.0
    %101 = vmatpush1.msra.mxu0 0.0
    %102 = vmatprep.subr.mxu0 0.0
    %103 = vmatpush1.msra.mxu0 0.0
    %104 = vmatprep.subr.mxu0 0.0
    %105 = vmatpush1.msra.mxu0 0.0
    %106 = vmatprep.subr.mxu0 0.0
    %107 = vmatpush1.msra.mxu0 0.0
    %108 = vmatprep.subr.mxu0 0.0
    %109 = vmatpush1.msra.mxu0 0.0
    %110 = vmatprep.subr.mxu0 0.0
    %111 = vmatpush1.msra.mxu0 0.0
    %112 = vmatprep.subr.mxu0 0.0
    %113 = vmatpush1.msra.mxu0 0.0
    %114 = vmatprep.subr.mxu0 0.0
    %115 = vmatpush1.msra.mxu0 0.0
    %116 = vmatprep.subr.mxu0 0.0
    %117 = vmatpush1.msra.mxu0 0.0
    %118 = vmatprep.subr.mxu0 0.0
    %119 = vmatpush1.msra.mxu0 0.0
    %120 = vmatprep.subr.mxu0 0.0
    %121 = vmatpush1.msra.mxu0 0.0
    %122 = vmatprep.subr.mxu0 0.0
    %123 = vmatpush1.msra.mxu0 0.0
    %124 = vmatprep.subr.mxu0 0.0
    %125 = vmatpush1.msra.mxu0 0.0
    %126 = vmatprep.subr.mxu0 0.0
    %127 = vmatpush1.msra.mxu0 0.0
    %128 = vmatprep.subr.mxu0 0.0
    %129 = vmatpush1.msra.mxu0 %v18
    %130 = vmatprep.subr.mxu0 0.0
    %131 = vmatpush1.msra.mxu0 %v17
    %132 = vmatprep.subr.mxu0 0.0
    %133 = vmatpush2.msra.mxu0 0.0
    %134 = vmatprep.subr.mxu0 0.0
    %135 = vmatpush2.msra.mxu0 0.0
    %136 = vmatprep.subr.mxu0 0.0
    %137 = vmatpush2.msra.mxu0 0.0
    %138 = vmatprep.subr.mxu0 0.0
    %139 = vmatpush2.msra.mxu0 0.0
    %140 = vmatprep.subr.mxu0 0.0
    %141 = vmatpush2.msra.mxu0 0.0
    %142 = vmatprep.subr.mxu0 0.0
    %143 = vmatpush2.msra.mxu0 0.0
    %144 = vmatprep.subr.mxu0 0.0
    %145 = vmatpush2.msra.mxu0 0.0
    %146 = vmatprep.subr.mxu0 0.0
    %147 = vmatpush2.msra.mxu0 0.0
    %148 = vmatprep.subr.mxu0 0.0
    %149 = vmatpush2.msra.mxu0 0.0
    %150 = vmatprep.subr.mxu0 0.0
    %151 = vmatpush2.msra.mxu0 0.0
    %152 = vmatprep.subr.mxu0 0.0
    %153 = vmatpush2.msra.mxu0 0.0
    %154 = vmatprep.subr.mxu0 0.0
    %155 = vmatpush2.msra.mxu0 0.0
    %156 = vmatprep.subr.mxu0 0.0
    %157 = vmatpush2.msra.mxu0 0.0
    %158 = vmatprep.subr.mxu0 0.0
    %159 = vmatpush2.msra.mxu0 0.0
    %160 = vmatprep.subr.mxu0 0.0
    %161 = vmatpush2.msra.mxu0 0.0
    %162 = vmatprep.subr.mxu0 0.0
    %163 = vmatpush2.msra.mxu0 0.0
    %164 = vmatprep.mubr.f32.mxu0 0.0
    %165 = vmatmul.mubr.f32.gmra.mxu0 %v98
    %v166 = vpop.f32.mrf.mxu0
    %v167 = vadd.f32 %v94, %v166
    %v168 = vpop.f32.mrf.mxu0
    %169 = vdwg.mxu0
    %v170 = vlaneseq
    %v171 = vshrl.u32 %v170, 7
    %v172 = vsub.s32 0, %v171
    %v173 = vrot.slane %v21, %v172
    %v174 = vadd.f32 %v167, %v173
    %v175 = vmax.f32 %v174, 0.0
    %v176 = vld [vmem:[%s2 + $0x28] sm:$0xff]
    %v177 = vld [vmem:[%s2 + $0x30] sm:$0xff]
    %v178 = vld [vmem:[%s2 + $0x38] sm:$0xff]
    %v179 = vld [vmem:[%s2 + $0x40] sm:$0xff]
    %v180 = vld [vmem:[%s2 + $0x48] sm:$0x1]
    %v181 = vlaneseq
    %v182 = vshrl.u32 %v181, 7
    %v183 = vsub.s32 0, %v182
    %v184 = vrot.slane %v180, %v183
    %vm185 = vcmask 261120
    %v187 = vsel %vm185, %v175, 0
    %189 = vmatprep.subr.mxu0 0.0
    %190 = vmatpush1.msra.mxu0 0.0
    %191 = vmatprep.subr.mxu0 0.0
    %192 = vmatpush1.msra.mxu0 0.0
    %193 = vmatprep.subr.mxu0 0.0
    %194 = vmatpush1.msra.mxu0 0.0
    %195 = vmatprep.subr.mxu0 0.0
    %196 = vmatpush1.msra.mxu0 0.0
    %197 = vmatprep.subr.mxu0 0.0
    %198 = vmatpush1.msra.mxu0 0.0
    %199 = vmatprep.subr.mxu0 0.0
    %200 = vmatpush1.msra.mxu0 0.0
    %201 = vmatprep.subr.mxu0 0.0
    %202 = vmatpush1.msra.mxu0 0.0
    %203 = vmatprep.subr.mxu0 0.0
    %204 = vmatpush1.msra.mxu0 0.0
    %205 = vmatprep.subr.mxu0 0.0
    %206 = vmatpush1.msra.mxu0 0.0
    %207 = vmatprep.subr.mxu0 0.0
    %208 = vmatpush1.msra.mxu0 0.0
    %209 = vmatprep.subr.mxu0 0.0
    %210 = vmatpush1.msra.mxu0 0.0
    %211 = vmatprep.subr.mxu0 0.0
    %212 = vmatpush1.msra.mxu0 0.0
    %213 = vmatprep.subr.mxu0 0.0
    %214 = vmatpush1.msra.mxu0 %v179
    %215 = vmatprep.subr.mxu0 0.0
    %216 = vmatpush1.msra.mxu0 %v178
    %217 = vmatprep.subr.mxu0 0.0
    %218 = vmatpush1.msra.mxu0 %v177
    %219 = vmatprep.subr.mxu0 0.0
    %220 = vmatpush1.msra.mxu0 %v176
    %221 = vmatprep.subr.mxu0 0.0
    %222 = vmatpush2.msra.mxu0 0.0
    %223 = vmatprep.subr.mxu0 0.0
    %224 = vmatpush2.msra.mxu0 0.0
    %225 = vmatprep.subr.mxu0 0.0
    %226 = vmatpush2.msra.mxu0 0.0
    %227 = vmatprep.subr.mxu0 0.0
    %228 = vmatpush2.msra.mxu0 0.0
    %229 = vmatprep.subr.mxu0 0.0
    %230 = vmatpush2.msra.mxu0 0.0
    %231 = vmatprep.subr.mxu0 0.0
    %232 = vmatpush2.msra.mxu0 0.0
    %233 = vmatprep.subr.mxu0 0.0
    %234 = vmatpush2.msra.mxu0 0.0
    %235 = vmatprep.subr.mxu0 0.0
    %236 = vmatpush2.msra.mxu0 0.0
    %237 = vmatprep.subr.mxu0 0.0
    %238 = vmatpush2.msra.mxu0 0.0
    %239 = vmatprep.subr.mxu0 0.0
    %240 = vmatpush2.msra.mxu0 0.0
    %241 = vmatprep.subr.mxu0 0.0
    %242 = vmatpush2.msra.mxu0 0.0
    %243 = vmatprep.subr.mxu0 0.0
    %244 = vmatpush2.msra.mxu0 0.0
    %245 = vmatprep.subr.mxu0 0.0
    %246 = vmatpush2.msra.mxu0 0.0
    %247 = vmatprep.subr.mxu0 0.0
    %248 = vmatpush2.msra.mxu0 0.0
    %249 = vmatprep.subr.mxu0 0.0
    %250 = vmatpush2.msra.mxu0 0.0
    %251 = vmatprep.subr.mxu0 0.0
    %252 = vmatpush2.msra.mxu0 0.0
    %253 = vmatprep.mubr.f32.mxu0 0.0
    %254 = vmatmul.mubr.f32.gmra.mxu0 %v187
    %v255 = vpop.f32.mrf.mxu0
    %v256 = vadd.f32 %v184, %v255
    %v257 = vpop.f32.mrf.mxu0
    %258 = vdwg.mxu0
    %v259 = vmax.f32 %v256, 0.0
    %v260 = vld [vmem:[%s2 + $0x50] sm:$0xff]
    %v261 = vld [vmem:[%s2 + $0x58] sm:$0xff]
    %v262 = vld [vmem:[%s2 + $0x60] sm:$0xff]
    %v263 = vld [vmem:[%s2 + $0x68] sm:$0xff]
    %v264 = vld [vmem:[%s2 + $0x70] sm:$0x1]
    %v265 = vlaneseq
    %v266 = vshrl.u32 %v265, 7
    %v267 = vsub.s32 0, %v266
    %v268 = vrot.slane %v264, %v267
    %v270 = vsel %vm185, %v259, 0
    %272 = vmatprep.subr.mxu0 0.0
    %273 = vmatpush1.msra.mxu0 0.0
    %274 = vmatprep.subr.mxu0 0.0
    %275 = vmatpush1.msra.mxu0 0.0
    %276 = vmatprep.subr.mxu0 0.0
    %277 = vmatpush1.msra.mxu0 0.0
    %278 = vmatprep.subr.mxu0 0.0
    %279 = vmatpush1.msra.mxu0 0.0
    %280 = vmatprep.subr.mxu0 0.0
    %281 = vmatpush1.msra.mxu0 0.0
    %282 = vmatprep.subr.mxu0 0.0
    %283 = vmatpush1.msra.mxu0 0.0
    %284 = vmatprep.subr.mxu0 0.0
    %285 = vmatpush1.msra.mxu0 0.0
    %286 = vmatprep.subr.mxu0 0.0
    %287 = vmatpush1.msra.mxu0 0.0
    %288 = vmatprep.subr.mxu0 0.0
    %289 = vmatpush1.msra.mxu0 0.0
    %290 = vmatprep.subr.mxu0 0.0
    %291 = vmatpush1.msra.mxu0 0.0
    %292 = vmatprep.subr.mxu0 0.0
    %293 = vmatpush1.msra.mxu0 0.0
    %294 = vmatprep.subr.mxu0 0.0
    %295 = vmatpush1.msra.mxu0 0.0
    %296 = vmatprep.subr.mxu0 0.0
    %297 = vmatpush1.msra.mxu0 %v263
    %298 = vmatprep.subr.mxu0 0.0
    %299 = vmatpush1.msra.mxu0 %v262
    %300 = vmatprep.subr.mxu0 0.0
    %301 = vmatpush1.msra.mxu0 %v261
    %302 = vmatprep.subr.mxu0 0.0
    %303 = vmatpush1.msra.mxu0 %v260
    %304 = vmatprep.subr.mxu0 0.0
    %305 = vmatpush2.msra.mxu0 0.0
    %306 = vmatprep.subr.mxu0 0.0
    %307 = vmatpush2.msra.mxu0 0.0
    %308 = vmatprep.subr.mxu0 0.0
    %309 = vmatpush2.msra.mxu0 0.0
    %310 = vmatprep.subr.mxu0 0.0
    %311 = vmatpush2.msra.mxu0 0.0
    %312 = vmatprep.subr.mxu0 0.0
    %313 = vmatpush2.msra.mxu0 0.0
    %314 = vmatprep.subr.mxu0 0.0
    %315 = vmatpush2.msra.mxu0 0.0
    %316 = vmatprep.subr.mxu0 0.0
    %317 = vmatpush2.msra.mxu0 0.0
    %318 = vmatprep.subr.mxu0 0.0
    %319 = vmatpush2.msra.mxu0 0.0
    %320 = vmatprep.subr.mxu0 0.0
    %321 = vmatpush2.msra.mxu0 0.0
    %322 = vmatprep.subr.mxu0 0.0
    %323 = vmatpush2.msra.mxu0 0.0
    %324 = vmatprep.subr.mxu0 0.0
    %325 = vmatpush2.msra.mxu0 0.0
    %326 = vmatprep.subr.mxu0 0.0
    %327 = vmatpush2.msra.mxu0 0.0
    %328 = vmatprep.subr.mxu0 0.0
    %329 = vmatpush2.msra.mxu0 0.0
    %330 = vmatprep.subr.mxu0 0.0
    %331 = vmatpush2.msra.mxu0 0.0
    %332 = vmatprep.subr.mxu0 0.0
    %333 = vmatpush2.msra.mxu0 0.0
    %334 = vmatprep.subr.mxu0 0.0
    %335 = vmatpush2.msra.mxu0 0.0
    %336 = vmatprep.mubr.f32.mxu0 0.0
    %337 = vmatmul.mubr.f32.gmra.mxu0 %v270
    %v338 = vpop.f32.mrf.mxu0
    %v339 = vadd.f32 %v268, %v338
    %v340 = vpop.f32.mrf.mxu0
    %341 = vdwg.mxu0
    %v342 = vmax.f32 %v339, 0.0
    %v343 = vld [vmem:[%s2 + $0x78] sm:$0xff]
    %v344 = vld [vmem:[%s2 + $0x80] sm:$0xff]
    %v345 = vld [vmem:[%s2 + $0x88] sm:$0xff]
    %v346 = vld [vmem:[%s2 + $0x90] sm:$0xff]
    %v347 = vld [vmem:[%s2 + $0x98] sm:$0x1]
    %v348 = vlaneseq
    %v349 = vshrl.u32 %v348, 7
    %v350 = vsub.s32 0, %v349
    %v351 = vrot.slane %v347, %v350
    %v353 = vsel %vm185, %v342, 0
    %355 = vmatprep.subr.mxu0 0.0
    %356 = vmatpush1.msra.mxu0 0.0
    %357 = vmatprep.subr.mxu0 0.0
    %358 = vmatpush1.msra.mxu0 0.0
    %359 = vmatprep.subr.mxu0 0.0
    %360 = vmatpush1.msra.mxu0 0.0
    %361 = vmatprep.subr.mxu0 0.0
    %362 = vmatpush1.msra.mxu0 0.0
    %363 = vmatprep.subr.mxu0 0.0
    %364 = vmatpush1.msra.mxu0 0.0
    %365 = vmatprep.subr.mxu0 0.0
    %366 = vmatpush1.msra.mxu0 0.0
    %367 = vmatprep.subr.mxu0 0.0
    %368 = vmatpush1.msra.mxu0 0.0
    %369 = vmatprep.subr.mxu0 0.0
    %370 = vmatpush1.msra.mxu0 0.0
    %371 = vmatprep.subr.mxu0 0.0
    %372 = vmatpush1.msra.mxu0 0.0
    %373 = vmatprep.subr.mxu0 0.0
    %374 = vmatpush1.msra.mxu0 0.0
    %375 = vmatprep.subr.mxu0 0.0
    %376 = vmatpush1.msra.mxu0 0.0
    %377 = vmatprep.subr.mxu0 0.0
    %378 = vmatpush1.msra.mxu0 0.0
    %379 = vmatprep.subr.mxu0 0.0
    %380 = vmatpush1.msra.mxu0 %v346
    %381 = vmatprep.subr.mxu0 0.0
    %382 = vmatpush1.msra.mxu0 %v345
    %383 = vmatprep.subr.mxu0 0.0
    %384 = vmatpush1.msra.mxu0 %v344
    %385 = vmatprep.subr.mxu0 0.0
    %386 = vmatpush1.msra.mxu0 %v343
    %387 = vmatprep.subr.mxu0 0.0
    %388 = vmatpush2.msra.mxu0 0.0
    %389 = vmatprep.subr.mxu0 0.0
    %390 = vmatpush2.msra.mxu0 0.0
    %391 = vmatprep.subr.mxu0 0.0
    %392 = vmatpush2.msra.mxu0 0.0
    %393 = vmatprep.subr.mxu0 0.0
    %394 = vmatpush2.msra.mxu0 0.0
    %395 = vmatprep.subr.mxu0 0.0
    %396 = vmatpush2.msra.mxu0 0.0
    %397 = vmatprep.subr.mxu0 0.0
    %398 = vmatpush2.msra.mxu0 0.0
    %399 = vmatprep.subr.mxu0 0.0
    %400 = vmatpush2.msra.mxu0 0.0
    %401 = vmatprep.subr.mxu0 0.0
    %402 = vmatpush2.msra.mxu0 0.0
    %403 = vmatprep.subr.mxu0 0.0
    %404 = vmatpush2.msra.mxu0 0.0
    %405 = vmatprep.subr.mxu0 0.0
    %406 = vmatpush2.msra.mxu0 0.0
    %407 = vmatprep.subr.mxu0 0.0
    %408 = vmatpush2.msra.mxu0 0.0
    %409 = vmatprep.subr.mxu0 0.0
    %410 = vmatpush2.msra.mxu0 0.0
    %411 = vmatprep.subr.mxu0 0.0
    %412 = vmatpush2.msra.mxu0 0.0
    %413 = vmatprep.subr.mxu0 0.0
    %414 = vmatpush2.msra.mxu0 0.0
    %415 = vmatprep.subr.mxu0 0.0
    %416 = vmatpush2.msra.mxu0 0.0
    %417 = vmatprep.subr.mxu0 0.0
    %418 = vmatpush2.msra.mxu0 0.0
    %419 = vmatprep.mubr.f32.mxu0 0.0
    %420 = vmatmul.mubr.f32.gmra.mxu0 %v353
    %v421 = vpop.f32.mrf.mxu0
    %v422 = vadd.f32 %v351, %v421
    %v423 = vpop.f32.mrf.mxu0
    %424 = vdwg.mxu0
    %vm425 = vcmask 64512
    %426 = vst.msk [vmem:[#allocation2] sm:$0xff] %vm425, %v422
    // Predicated region
    $region14: #{tpu_custom_call.1} parent=1 // pred_check
      _
    $region15: #{tpu_custom_call.1} parent=1 // pred_check_branch
      %428 = sbr.rel (0) target = $region17
    $region16: #{tpu_custom_call.1} parent=1 // pred_region
      %s430 = ssub.s32 128, 128
      %431 = vsyncadd [#allocation3], %s430
      %s433 = sshll.u32 [#allocation2], 4
      %s434 = int_to_ptr.vmem [resolvable:$true] %s433
      %436 = dma.vmem_to_hbm [thread:$0]  %s434, 128, %s3, [#allocation3]
    $region17: #{tpu_custom_call.1} parent=1 // pred_fallthru
      _
    // Predicated region
    $region18: #{tpu_custom_call.1} parent=1 // pred_check
      _
    $region19: #{tpu_custom_call.1} parent=1 // pred_check_branch
      %438 = sbr.rel (0) target = $region21
    $region20: #{tpu_custom_call.1} parent=1 // pred_region
      %439 = dma.done [#allocation3], 128
    $region21: #{tpu_custom_call.1} parent=1 // pred_fallthru
      _
    %440 = vsyncpa [#allocation3], 1

</llo_original>
